<compile_context>
chip_gen: v5e
topology: v5e:2x2
jax: 0.10.0
libtpu: 0.0.40
codegen_flags: <defaults>
</compile_context>

<pallas_src>
import jax
import jax.numpy as jnp
from jax.experimental import pallas as pl
from jax.experimental.pallas import tpu as pltpu

LANE = 128  # TPU lane width — final-layer output is padded to a multiple of this.


def _round_up(x, m):
    return -(-x // m) * m


def _choose_sub(tm):
    """Sub-block rows: 2–4 independent MXU->VPU chains per tile."""
    for sub in (256, 128, 64, 32, 16):
        if tm >= 2 * sub and tm % sub == 0:
            return sub
    return tm


def _make_kernel(tm, sub):
    n_sub = tm // sub

    def mlp_kernel(x_ref, w1_ref, b1_ref, w2_ref, b2_ref,
                   w3_ref, b3_ref, w4_ref, b4_ref, o_ref):
        # Static unroll over sub-blocks: each chain is independent, letting the
        # scheduler overlap MXU passes of one chunk with VPU (bias/ReLU/cast)
        # of the previous one. Biases stay f32 on the accumulator (v5e-safe).
        for c in range(n_sub):
            rows = pl.ds(c * sub, sub)
            x = x_ref[rows, :].astype(jnp.bfloat16)          # in-kernel cast

            h = jnp.dot(x, w1_ref[...],
                        preferred_element_type=jnp.float32) + b1_ref[...]
            h = jnp.maximum(h, 0.0)

            h = jnp.dot(h.astype(jnp.bfloat16), w2_ref[...],
                        preferred_element_type=jnp.float32) + b2_ref[...]
            h = jnp.maximum(h, 0.0)

            h = jnp.dot(h.astype(jnp.bfloat16), w3_ref[...],
                        preferred_element_type=jnp.float32) + b3_ref[...]
            h = jnp.maximum(h, 0.0)

            out = jnp.dot(h.astype(jnp.bfloat16), w4_ref[...],
                          preferred_element_type=jnp.float32) + b4_ref[...]
            o_ref[rows, :] = out.astype(jnp.bfloat16)         # lane-dense bf16 store

    return mlp_kernel


def prepare_params(raw, n_actions=None):
    """One-time parameter prep (hoisted out of the per-call path):
    bf16 weights, f32 biases, final layer zero-padded to 128 output lanes."""
    if n_actions is None:
        n_actions = raw["w4"].shape[1]
    n_out_pad = max(LANE, _round_up(n_actions, LANE))
    pad = n_out_pad - n_actions
    p = {
        "w1": raw["w1"].astype(jnp.bfloat16), "b1": raw["b1"].astype(jnp.float32),
        "w2": raw["w2"].astype(jnp.bfloat16), "b2": raw["b2"].astype(jnp.float32),
        "w3": raw["w3"].astype(jnp.bfloat16), "b3": raw["b3"].astype(jnp.float32),
        "w4": jnp.pad(raw["w4"], ((0, 0), (0, pad))).astype(jnp.bfloat16),
        "b4": jnp.pad(raw["b4"], ((0, 0), (0, pad))).astype(jnp.float32),
        "n_actions": n_actions,
    }
    return p


def mlp_forward(x, params, *, block_m=1024, slice_output=True):
    """x: [B, ...] (flattened to [B, n_states]); params from prepare_params()."""
    B = x.shape[0]
    x = x.reshape(B, -1)                      # torch.flatten(x, start_dim=1)
    n_states = x.shape[1]
    n_actions = params["n_actions"]
    n_out_pad = params["w4"].shape[1]

    # --- batch tiling ------------------------------------------------------
    # bf16 packs 16 rows per sublane-packed vreg -> pad/tile in multiples of 16.
    b16 = _round_up(B, 16)
    tm = max(16, min(block_m, pl.next_power_of_2(b16)))
    # v7x megacore: keep >=2 grid steps when the batch allows so the
    # "parallel" batch axis shards across both TensorCores.
    if b16 >= 32:
        while tm > 16 and _round_up(b16, tm) // tm < 2:
            tm //= 2
    b_pad = _round_up(b16, tm)
    if b_pad != B:
        x = jnp.pad(x, ((0, b_pad - B), (0, 0)))   # zero rows, sliced off below

    sub = _choose_sub(tm)
    grid = (b_pad // tm,)

    def resident(shape):
        # Weights / biases: constant block index -> VMEM-resident across the grid.
        return pl.BlockSpec(shape, lambda i: (0, 0))

    in_specs = [
        pl.BlockSpec((tm, n_states), lambda i: (i, 0)),   # x streams over batch
        resident(params["w1"].shape), resident(params["b1"].shape),
        resident(params["w2"].shape), resident(params["b2"].shape),
        resident(params["w3"].shape), resident(params["b3"].shape),
        resident(params["w4"].shape), resident(params["b4"].shape),
    ]

    out = pl.pallas_call(
        _make_kernel(tm, sub),
        out_shape=jax.ShapeDtypeStruct((b_pad, n_out_pad), jnp.bfloat16),
        grid=grid,
        in_specs=in_specs,
        out_specs=pl.BlockSpec((tm, n_out_pad), lambda i: (i, 0)),
        compiler_params=pltpu.CompilerParams(
            dimension_semantics=("parallel",),      # shard batch tiles across TCs (v7x)
            vmem_limit_bytes=32 * 1024 * 1024,      # raises v5e's 16 MiB default; safe on 64 MiB v7x
        ),
    )(x,
      params["w1"], params["b1"],
      params["w2"], params["b2"],
      params["w3"], params["b3"],
      params["w4"], params["b4"])

    if slice_output:
        # Extra HBM pass; consumers that can read the padded (b_pad, 128) bf16
        # slab directly (e.g. argmax over the first n_actions lanes) should
        # pass slice_output=False.
        return out[:B, :n_actions]
    return out


def init_params(key, n_states, n_actions, hidden_dim=128):
    """Synthetic parameters matching nn.Linear init (f32 'master' copy)."""
    keys = jax.random.split(key, 8)

    def linear(kw, kb, fan_in, fan_out):
        bound = 1.0 / jnp.sqrt(jnp.float32(fan_in))
        w = jax.random.uniform(kw, (fan_in, fan_out), jnp.float32, -bound, bound)
        b = jax.random.uniform(kb, (1, fan_out), jnp.float32, -bound, bound)
        return w, b

    w1, b1 = linear(keys[0], keys[1], n_states, hidden_dim)
    w2, b2 = linear(keys[2], keys[3], hidden_dim, hidden_dim)
    w3, b3 = linear(keys[4], keys[5], hidden_dim, hidden_dim)
    w4, b4 = linear(keys[6], keys[7], hidden_dim, n_actions)
    return dict(w1=w1, b1=b1, w2=w2, b2=b2, w3=w3, b3=b3, w4=w4, b4=b4)


def mlp_reference(x, raw_params):
    """Pure-JAX reference mirroring the kernel's bf16-in / f32-accumulate math."""
    x = x.reshape(x.shape[0], -1)

    def lin(h, w, b):
        return jnp.dot(h.astype(jnp.bfloat16), w.astype(jnp.bfloat16),
                       preferred_element_type=jnp.float32) + b

    h = jnp.maximum(lin(x, raw_params["w1"], raw_params["b1"]), 0.0)
    h = jnp.maximum(lin(h, raw_params["w2"], raw_params["b2"]), 0.0)
    h = jnp.maximum(lin(h, raw_params["w3"], raw_params["b3"]), 0.0)
    out = lin(h, raw_params["w4"], raw_params["b4"])
    return out.astype(jnp.bfloat16).astype(jnp.float32)   # kernel stores bf16


if __name__ == "__main__":
    key = jax.random.PRNGKey(0)
    k_param, k_x = jax.random.split(key)

    batch = 2
    n_actions = 4
    hidden_dim = 128
    obs_shape = (4, 2, 2)                 # flattened -> n_states = 16
    n_states = 4 * 2 * 2

    raw = init_params(k_param, n_states, n_actions, hidden_dim)
    params = prepare_params(raw)          # one-time: bf16 cast + lane-pad fc4
    x = jax.random.normal(k_x, (batch,) + obs_shape, jnp.float32)

    out = mlp_forward(x, params)
    jax.block_until_ready(out)

    ref = mlp_reference(x, raw)
    assert out.shape == (batch, n_actions)
    assert jnp.allclose(out.astype(jnp.float32), ref, atol=2e-2, rtol=2e-2), (
        f"max abs diff {jnp.max(jnp.abs(out.astype(jnp.float32) - ref))}")

    print("KERNEL_OK")
</pallas_src>

<mosaic_0001>
module attributes {stable_mosaic.version = 11 : i64} {
  func.func @mlp_kernel(%arg0: i32, %arg1: memref<16x16xf32, #tpu.memory_space<vmem>>, %arg2: memref<16x128xbf16, #tpu.memory_space<vmem>>, %arg3: memref<1x128xf32, #tpu.memory_space<vmem>>, %arg4: memref<128x128xbf16, #tpu.memory_space<vmem>>, %arg5: memref<1x128xf32, #tpu.memory_space<vmem>>, %arg6: memref<128x128xbf16, #tpu.memory_space<vmem>>, %arg7: memref<1x128xf32, #tpu.memory_space<vmem>>, %arg8: memref<128x128xbf16, #tpu.memory_space<vmem>>, %arg9: memref<1x128xf32, #tpu.memory_space<vmem>>, %arg10: memref<16x128xbf16, #tpu.memory_space<vmem>>) attributes {dimension_semantics = [#tpu.dimension_semantics<parallel>], iteration_bounds = array<i64: 1>, scalar_prefetch = 0 : i64, scratch_operands = 0 : i64, tpu.core_type = #tpu.core_type<tc>, window_params = [{transform_indices = @transform_0, window_bounds = array<i64: 16, 16>}, {pipeline_mode = #tpu.pipeline_mode<synchronous>, transform_indices = @transform_1, window_bounds = array<i64: 16, 128>}, {pipeline_mode = #tpu.pipeline_mode<synchronous>, transform_indices = @transform_2, window_bounds = array<i64: 1, 128>}, {pipeline_mode = #tpu.pipeline_mode<synchronous>, transform_indices = @transform_3, window_bounds = array<i64: 128, 128>}, {pipeline_mode = #tpu.pipeline_mode<synchronous>, transform_indices = @transform_4, window_bounds = array<i64: 1, 128>}, {pipeline_mode = #tpu.pipeline_mode<synchronous>, transform_indices = @transform_5, window_bounds = array<i64: 128, 128>}, {pipeline_mode = #tpu.pipeline_mode<synchronous>, transform_indices = @transform_6, window_bounds = array<i64: 1, 128>}, {pipeline_mode = #tpu.pipeline_mode<synchronous>, transform_indices = @transform_7, window_bounds = array<i64: 128, 128>}, {pipeline_mode = #tpu.pipeline_mode<synchronous>, transform_indices = @transform_8, window_bounds = array<i64: 1, 128>}, {transform_indices = @transform_9, window_bounds = array<i64: 16, 128>}]} {
    %c0 = arith.constant 0 : index
    %c0_0 = arith.constant 0 : index
    %0 = vector.load %arg1[%c0, %c0_0] : memref<16x16xf32, #tpu.memory_space<vmem>>, vector<16x16xf32>
    %1 = arith.truncf %0 : vector<16x16xf32> to vector<16x16xbf16>
    %c0_1 = arith.constant 0 : index
    %c0_2 = arith.constant 0 : index
    %2 = vector.load %arg2[%c0_1, %c0_2] : memref<16x128xbf16, #tpu.memory_space<vmem>>, vector<16x128xbf16>
    %cst = arith.constant dense<0.000000e+00> : vector<16x128xf32>
    %3 = tpu.matmul %1, %2, %cst {dimension_numbers = #tpu.dot_dimension_numbers<[1], [0], [0], [1], [0, 0, 1, 1], [], []>} : vector<16x16xbf16>, vector<16x128xbf16>, vector<16x128xf32> -> vector<16x128xf32>
    %c0_3 = arith.constant 0 : index
    %c0_4 = arith.constant 0 : index
    %4 = vector.load %arg3[%c0_3, %c0_4] : memref<1x128xf32, #tpu.memory_space<vmem>>, vector<1x128xf32>
    %5 = vector.broadcast %4 : vector<1x128xf32> to vector<16x128xf32>
    %6 = arith.addf %3, %5 : vector<16x128xf32>
    %cst_5 = arith.constant 0.000000e+00 : f32
    %7 = vector.broadcast %cst_5 : f32 to vector<16x128xf32>
    %8 = arith.maximumf %6, %7 : vector<16x128xf32>
    %9 = arith.truncf %8 : vector<16x128xf32> to vector<16x128xbf16>
    %c0_6 = arith.constant 0 : index
    %c0_7 = arith.constant 0 : index
    %10 = vector.load %arg4[%c0_6, %c0_7] : memref<128x128xbf16, #tpu.memory_space<vmem>>, vector<128x128xbf16>
    %cst_8 = arith.constant dense<0.000000e+00> : vector<16x128xf32>
    %11 = tpu.matmul %9, %10, %cst_8 {dimension_numbers = #tpu.dot_dimension_numbers<[1], [0], [0], [1], [0, 0, 1, 1], [], []>} : vector<16x128xbf16>, vector<128x128xbf16>, vector<16x128xf32> -> vector<16x128xf32>
    %c0_9 = arith.constant 0 : index
    %c0_10 = arith.constant 0 : index
    %12 = vector.load %arg5[%c0_9, %c0_10] : memref<1x128xf32, #tpu.memory_space<vmem>>, vector<1x128xf32>
    %13 = vector.broadcast %12 : vector<1x128xf32> to vector<16x128xf32>
    %14 = arith.addf %11, %13 : vector<16x128xf32>
    %cst_11 = arith.constant 0.000000e+00 : f32
    %15 = vector.broadcast %cst_11 : f32 to vector<16x128xf32>
    %16 = arith.maximumf %14, %15 : vector<16x128xf32>
    %17 = arith.truncf %16 : vector<16x128xf32> to vector<16x128xbf16>
    %c0_12 = arith.constant 0 : index
    %c0_13 = arith.constant 0 : index
    %18 = vector.load %arg6[%c0_12, %c0_13] : memref<128x128xbf16, #tpu.memory_space<vmem>>, vector<128x128xbf16>
    %cst_14 = arith.constant dense<0.000000e+00> : vector<16x128xf32>
    %19 = tpu.matmul %17, %18, %cst_14 {dimension_numbers = #tpu.dot_dimension_numbers<[1], [0], [0], [1], [0, 0, 1, 1], [], []>} : vector<16x128xbf16>, vector<128x128xbf16>, vector<16x128xf32> -> vector<16x128xf32>
    %c0_15 = arith.constant 0 : index
    %c0_16 = arith.constant 0 : index
    %20 = vector.load %arg7[%c0_15, %c0_16] : memref<1x128xf32, #tpu.memory_space<vmem>>, vector<1x128xf32>
    %21 = vector.broadcast %20 : vector<1x128xf32> to vector<16x128xf32>
    %22 = arith.addf %19, %21 : vector<16x128xf32>
    %cst_17 = arith.constant 0.000000e+00 : f32
    %23 = vector.broadcast %cst_17 : f32 to vector<16x128xf32>
    %24 = arith.maximumf %22, %23 : vector<16x128xf32>
    %25 = arith.truncf %24 : vector<16x128xf32> to vector<16x128xbf16>
    %c0_18 = arith.constant 0 : index
    %c0_19 = arith.constant 0 : index
    %26 = vector.load %arg8[%c0_18, %c0_19] : memref<128x128xbf16, #tpu.memory_space<vmem>>, vector<128x128xbf16>
    %cst_20 = arith.constant dense<0.000000e+00> : vector<16x128xf32>
    %27 = tpu.matmul %25, %26, %cst_20 {dimension_numbers = #tpu.dot_dimension_numbers<[1], [0], [0], [1], [0, 0, 1, 1], [], []>} : vector<16x128xbf16>, vector<128x128xbf16>, vector<16x128xf32> -> vector<16x128xf32>
    %c0_21 = arith.constant 0 : index
    %c0_22 = arith.constant 0 : index
    %28 = vector.load %arg9[%c0_21, %c0_22] : memref<1x128xf32, #tpu.memory_space<vmem>>, vector<1x128xf32>
    %29 = vector.broadcast %28 : vector<1x128xf32> to vector<16x128xf32>
    %30 = arith.addf %27, %29 : vector<16x128xf32>
    %31 = arith.truncf %30 : vector<16x128xf32> to vector<16x128xbf16>
    %c0_23 = arith.constant 0 : index
    %c0_24 = arith.constant 0 : index
    %32 = vector.load %arg10[%c0_23, %c0_24] : memref<16x128xbf16, #tpu.memory_space<vmem>>, vector<16x128xbf16>
    tpu.vector_store %arg10[%c0_23, %c0_24], %31 {strides = array<i32>} : memref<16x128xbf16, #tpu.memory_space<vmem>>, vector<16x128xbf16>,
    return
  }
  func.func @transform_0(%arg0: i32) -> (i32, i32) {
    %c0_i32 = arith.constant 0 : i32
    %c0_i32_0 = arith.constant 0 : i32
    return %arg0, %c0_i32 : i32, i32
  }
  func.func @transform_1(%arg0: i32) -> (i32, i32) {
    %c0_i32 = arith.constant 0 : i32
    %c0_i32_0 = arith.constant 0 : i32
    %c0_i32_1 = arith.constant 0 : i32
    return %c0_i32, %c0_i32_0 : i32, i32
  }
  func.func @transform_2(%arg0: i32) -> (i32, i32) {
    %c0_i32 = arith.constant 0 : i32
    %c0_i32_0 = arith.constant 0 : i32
    %c0_i32_1 = arith.constant 0 : i32
    return %c0_i32, %c0_i32_0 : i32, i32
  }
  func.func @transform_3(%arg0: i32) -> (i32, i32) {
    %c0_i32 = arith.constant 0 : i32
    %c0_i32_0 = arith.constant 0 : i32
    %c0_i32_1 = arith.constant 0 : i32
    return %c0_i32, %c0_i32_0 : i32, i32
  }
  func.func @transform_4(%arg0: i32) -> (i32, i32) {
    %c0_i32 = arith.constant 0 : i32
    %c0_i32_0 = arith.constant 0 : i32
    %c0_i32_1 = arith.constant 0 : i32
    return %c0_i32, %c0_i32_0 : i32, i32
  }
  func.func @transform_5(%arg0: i32) -> (i32, i32) {
    %c0_i32 = arith.constant 0 : i32
    %c0_i32_0 = arith.constant 0 : i32
    %c0_i32_1 = arith.constant 0 : i32
    return %c0_i32, %c0_i32_0 : i32, i32
  }
  func.func @transform_6(%arg0: i32) -> (i32, i32) {
    %c0_i32 = arith.constant 0 : i32
    %c0_i32_0 = arith.constant 0 : i32
    %c0_i32_1 = arith.constant 0 : i32
    return %c0_i32, %c0_i32_0 : i32, i32
  }
  func.func @transform_7(%arg0: i32) -> (i32, i32) {
    %c0_i32 = arith.constant 0 : i32
    %c0_i32_0 = arith.constant 0 : i32
    %c0_i32_1 = arith.constant 0 : i32
    return %c0_i32, %c0_i32_0 : i32, i32
  }
  func.func @transform_8(%arg0: i32) -> (i32, i32) {
    %c0_i32 = arith.constant 0 : i32
    %c0_i32_0 = arith.constant 0 : i32
    %c0_i32_1 = arith.constant 0 : i32
    return %c0_i32, %c0_i32_0 : i32, i32
  }
  func.func @transform_9(%arg0: i32) -> (i32, i32) {
    %c0_i32 = arith.constant 0 : i32
    %c0_i32_0 = arith.constant 0 : i32
    return %arg0, %c0_i32 : i32, i32
  }
}

</mosaic_0001>

<llo_original>
// kernel: tpu_custom_call.1
$region0: #{tpu_custom_call.1}
  #allocation0 [shape = 'u32[]', space=smem, size = 0x4, offset = 0x4, fixed_abs, tag = 'smem constant byte address 0x4 - core index']
  #allocation1 [shape = 'u32[72,128]{1,0:T(1,128)}', space=vmem, size = 0x9000, scoped, tag = 'internal scratch']
  %s0 = inlined_call_operand.hbm [shape: f32[16,16], index: 0, kind: input, shape index: {}]
  %s1 = inlined_call_operand.hbm [shape: bf16[16,128], index: 1, kind: input, shape index: {}]
  %s2 = inlined_call_operand.vmem [shape: f32[1,128], index: 2, kind: input, shape index: {}]
  %s3 = inlined_call_operand.hbm [shape: bf16[128,128], index: 3, kind: input, shape index: {}]
  %s4 = inlined_call_operand.vmem [shape: f32[1,128], index: 4, kind: input, shape index: {}]
  %s5 = inlined_call_operand.hbm [shape: bf16[128,128], index: 5, kind: input, shape index: {}]
  %s6 = inlined_call_operand.vmem [shape: f32[1,128], index: 6, kind: input, shape index: {}]
  %s7 = inlined_call_operand.hbm [shape: bf16[128,128], index: 7, kind: input, shape index: {}]
  %s8 = inlined_call_operand.vmem [shape: f32[1,128], index: 8, kind: input, shape index: {}]
  %s9 = inlined_call_operand.hbm [shape: bf16[16,128], index: 9, kind: output, shape index: {}]
  %s10 = sld [smem:[#allocation0]]
  $region66: #{tpu_custom_call.1} parent=0
    _
  %s12 = ssub.s32 1, %s10
  %s13 = scalar_select 0, %s12, %s10
  $region1: #{tpu_custom_call.1} parent=0
    #allocation2 [shape = 'u8[8192]{0}', space=vmem, size = 0x2000, scoped, tag = 'input window, operand 0, single buffered']
    #allocation3 [shape = 's32[1]{0}', space=sflag, size = 0x4, scoped, tag = 'scoped memory for tpu_custom_call.1']
    #allocation4 [shape = 's32[1]{0}', space=sflag, size = 0x4, scoped, tag = 'scoped memory for tpu_custom_call.1']
    #allocation5 [shape = 'u8[4096]{0}', space=vmem, size = 0x1000, scoped, tag = 'input window, operand 1, single buffered']
    #allocation6 [shape = 's32[1]{0}', space=sflag, size = 0x4, scoped, tag = 'scoped memory for tpu_custom_call.1']
    #allocation7 [shape = 'u8[32768]{0}', space=vmem, size = 0x8000, scoped, tag = 'input window, operand 3, single buffered']
    #allocation8 [shape = 'u8[32768]{0}', space=vmem, size = 0x8000, scoped, tag = 'input window, operand 5, single buffered']
    #allocation9 [shape = 's32[1]{0}', space=sflag, size = 0x4, scoped, tag = 'scoped memory for tpu_custom_call.1']
    #allocation10 [shape = 'u8[32768]{0}', space=vmem, size = 0x8000, scoped, tag = 'input window, operand 7, single buffered']
    #allocation11 [shape = 'u8[4096]{0}', space=vmem, size = 0x1000, scoped, tag = 'output window, operand 0, single buffered']
    %14 = vsyncpa [#allocation3], 0
    %15 = vsyncpa [#allocation6], 0
    %16 = vsyncpa [#allocation9], 0
    %17 = vsyncpa [#allocation4], 0
    // Predicated region
    $region2: #{tpu_custom_call.1} parent=1 // pred_check
      _
    $region3: #{tpu_custom_call.1} parent=1 // pred_check_branch
      %19 = sbr.rel (0) target = $region5
    $region4: #{tpu_custom_call.1} parent=1 // pred_region
      %21 = vsyncadd [#allocation3], 0
      %s22 = sshll.u32 %s0, 4
      %s23 = int_to_ptr.hbm [resolvable:$true] %s22
      %s24 = sshll.u32 [#allocation2], 4
      %s25 = int_to_ptr.vmem [resolvable:$true] %s24
      %30 = dma.hbm_to_vmem [thread:$0]  %s23, 256, %s25, [#allocation3], 128, 128, 8
    $region5: #{tpu_custom_call.1} parent=1 // pred_fallthru
      _
    // Predicated region
    $region6: #{tpu_custom_call.1} parent=1 // pred_check
      _
    $region7: #{tpu_custom_call.1} parent=1 // pred_check_branch
      %32 = sbr.rel (0) target = $region9
    $region8: #{tpu_custom_call.1} parent=1 // pred_region
      %34 = vsyncadd [#allocation6], 0
      %s35 = sshll.u32 %s1, 4
      %s36 = int_to_ptr.hbm [resolvable:$true] %s35
      %s37 = sshll.u32 [#allocation5], 4
      %s38 = int_to_ptr.vmem [resolvable:$true] %s37
      %43 = dma.hbm_to_vmem [thread:$0]  %s36, 128, %s38, [#allocation6], 64, 64, 4
    $region9: #{tpu_custom_call.1} parent=1 // pred_fallthru
      _
    // Predicated region
    $region10: #{tpu_custom_call.1} parent=1 // pred_check
      _
    $region11: #{tpu_custom_call.1} parent=1 // pred_check_branch
      %45 = sbr.rel (0) target = $region13
    $region12: #{tpu_custom_call.1} parent=1 // pred_region
      _
    $region13: #{tpu_custom_call.1} parent=1 // pred_fallthru
      _
    // Predicated region
    $region14: #{tpu_custom_call.1} parent=1 // pred_check
      _
    $region15: #{tpu_custom_call.1} parent=1 // pred_check_branch
      %47 = sbr.rel (0) target = $region17
    $region16: #{tpu_custom_call.1} parent=1 // pred_region
      %49 = vsyncadd [#allocation6], 0
      %s50 = sshll.u32 %s3, 4
      %s51 = int_to_ptr.hbm [resolvable:$true] %s50
      %s52 = sshll.u32 [#allocation7], 4
      %s53 = int_to_ptr.vmem [resolvable:$true] %s52
      %58 = dma.hbm_to_vmem [thread:$0]  %s51, 1024, %s53, [#allocation6], 64, 64, 4
    $region17: #{tpu_custom_call.1} parent=1 // pred_fallthru
      _
    // Predicated region
    $region18: #{tpu_custom_call.1} parent=1 // pred_check
      _
    $region19: #{tpu_custom_call.1} parent=1 // pred_check_branch
      %60 = sbr.rel (0) target = $region21
    $region20: #{tpu_custom_call.1} parent=1 // pred_region
      _
    $region21: #{tpu_custom_call.1} parent=1 // pred_fallthru
      _
    // Predicated region
    $region22: #{tpu_custom_call.1} parent=1 // pred_check
      _
    $region23: #{tpu_custom_call.1} parent=1 // pred_check_branch
      %62 = sbr.rel (0) target = $region25
    $region24: #{tpu_custom_call.1} parent=1 // pred_region
      %64 = vsyncadd [#allocation9], 0
      %s65 = sshll.u32 %s5, 4
      %s66 = int_to_ptr.hbm [resolvable:$true] %s65
      %s67 = sshll.u32 [#allocation8], 4
      %s68 = int_to_ptr.vmem [resolvable:$true] %s67
      %73 = dma.hbm_to_vmem [thread:$0]  %s66, 1024, %s68, [#allocation9], 64, 64, 4
    $region25: #{tpu_custom_call.1} parent=1 // pred_fallthru
      _
    // Predicated region
    $region26: #{tpu_custom_call.1} parent=1 // pred_check
      _
    $region27: #{tpu_custom_call.1} parent=1 // pred_check_branch
      %75 = sbr.rel (0) target = $region29
    $region28: #{tpu_custom_call.1} parent=1 // pred_region
      _
    $region29: #{tpu_custom_call.1} parent=1 // pred_fallthru
      _
    // Predicated region
    $region30: #{tpu_custom_call.1} parent=1 // pred_check
      _
    $region31: #{tpu_custom_call.1} parent=1 // pred_check_branch
      %77 = sbr.rel (0) target = $region33
    $region32: #{tpu_custom_call.1} parent=1 // pred_region
      %79 = vsyncadd [#allocation9], 0
      %s80 = sshll.u32 %s7, 4
      %s81 = int_to_ptr.hbm [resolvable:$true] %s80
      %s82 = sshll.u32 [#allocation10], 4
      %s83 = int_to_ptr.vmem [resolvable:$true] %s82
      %88 = dma.hbm_to_vmem [thread:$0]  %s81, 1024, %s83, [#allocation9], 64, 64, 4
    $region33: #{tpu_custom_call.1} parent=1 // pred_fallthru
      _
    // Predicated region
    $region34: #{tpu_custom_call.1} parent=1 // pred_check
      _
    $region35: #{tpu_custom_call.1} parent=1 // pred_check_branch
      %90 = sbr.rel (0) target = $region37
    $region36: #{tpu_custom_call.1} parent=1 // pred_region
      _
    $region37: #{tpu_custom_call.1} parent=1 // pred_fallthru
      _
    // Predicated region
    $region38: #{tpu_custom_call.1} parent=1 // pred_check
      _
    $region39: #{tpu_custom_call.1} parent=1 // pred_check_branch
      %92 = sbr.rel (0) target = $region41
    $region40: #{tpu_custom_call.1} parent=1 // pred_region
      %94 = dma.done [#allocation3], 256
    $region41: #{tpu_custom_call.1} parent=1 // pred_fallthru
      _
    // Predicated region
    $region42: #{tpu_custom_call.1} parent=1 // pred_check
      _
    $region43: #{tpu_custom_call.1} parent=1 // pred_check_branch
      %96 = sbr.rel (0) target = $region45
    $region44: #{tpu_custom_call.1} parent=1 // pred_region
      %98 = dma.done [#allocation6], 128
    $region45: #{tpu_custom_call.1} parent=1 // pred_fallthru
      _
    // Predicated region
    $region46: #{tpu_custom_call.1} parent=1 // pred_check
      _
    $region47: #{tpu_custom_call.1} parent=1 // pred_check_branch
      %100 = sbr.rel (0) target = $region49
    $region48: #{tpu_custom_call.1} parent=1 // pred_region
      %102 = dma.done [#allocation6], 1024
    $region49: #{tpu_custom_call.1} parent=1 // pred_fallthru
      _
    // Predicated region
    $region50: #{tpu_custom_call.1} parent=1 // pred_check
      _
    $region51: #{tpu_custom_call.1} parent=1 // pred_check_branch
      %104 = sbr.rel (0) target = $region53
    $region52: #{tpu_custom_call.1} parent=1 // pred_region
      %106 = dma.done [#allocation9], 1024
    $region53: #{tpu_custom_call.1} parent=1 // pred_fallthru
      _
    // Predicated region
    $region54: #{tpu_custom_call.1} parent=1 // pred_check
      _
    $region55: #{tpu_custom_call.1} parent=1 // pred_check_branch
      %108 = sbr.rel (0) target = $region57
    $region56: #{tpu_custom_call.1} parent=1 // pred_region
      %110 = dma.done [#allocation9], 1024
    $region57: #{tpu_custom_call.1} parent=1 // pred_fallthru
      _
    %v112 = vld [vmem:[#allocation2] sm:$0xff]
    %v113 = vld [vmem:[#allocation2 + $0x8] sm:$0xff]
    %v114 = vpack.c.bf16 %v113, %v112
    %v115 = vld [vmem:[#allocation5] sm:$0xf]
    %v116 = vld [vmem:[#allocation5 + $0x4] sm:$0xf]
    %v117 = vld [vmem:[%s2] sm:$0x1]
    %v119 = vperm.slane %v117, 0
    %v123 = vunpack.c.l.b16 %v115
    %v124 = vunpack.c.l.b16 %v116
    %v125 = vpack.c.b16 %v124, %v123
    %vm127 = vcmask 130048
    %v129 = vsel %vm127, %v114, 0
    %131 = vmatpush.bf16.msra.mxu0 0
    %132 = vmatpush.bf16.msra.mxu0 0
    %133 = vmatpush.bf16.msra.mxu0 0
    %134 = vmatpush.bf16.msra.mxu0 0
    %135 = vmatpush.bf16.msra.mxu0 0
    %136 = vmatpush.bf16.msra.mxu0 0
    %137 = vmatpush.bf16.msra.mxu0 0
    %138 = vmatpush.bf16.msra.mxu0 %v125
    %139 = vmatmul.bf16.gmra.mxu0 %v129
    %v140 = vpop.f32.mrf.mxu0
    %v141 = vadd.f32 %v119, %v140
    %v142 = vpop.f32.mrf.mxu0
    %v143 = vadd.f32 %v119, %v142
    %144 = vdwg.mxu0
    %v145 = vmax.f32 %v141, 0.0
    %v146 = vmax.f32 %v143, 0.0
    %v147 = vpack.c.bf16 %v146, %v145
    %v148 = vld [vmem:[#allocation7] sm:$0xf]
    %v149 = vld [vmem:[#allocation7 + $0x4] sm:$0xf]
    %v150 = vld [vmem:[#allocation7 + $0x8] sm:$0xf]
    %v151 = vld [vmem:[#allocation7 + $0xc] sm:$0xf]
    %v152 = vld [vmem:[#allocation7 + $0x10] sm:$0xf]
    %v153 = vld [vmem:[#allocation7 + $0x14] sm:$0xf]
    %v154 = vld [vmem:[#allocation7 + $0x18] sm:$0xf]
    %v155 = vld [vmem:[#allocation7 + $0x1c] sm:$0xf]
    %v156 = vld [vmem:[#allocation7 + $0x20] sm:$0xf]
    %v157 = vld [vmem:[#allocation7 + $0x24] sm:$0xf]
    %v158 = vld [vmem:[#allocation7 + $0x28] sm:$0xf]
    %v159 = vld [vmem:[#allocation7 + $0x2c] sm:$0xf]
    %v160 = vld [vmem:[#allocation7 + $0x30] sm:$0xf]
    %v161 = vld [vmem:[#allocation7 + $0x34] sm:$0xf]
    %v162 = vld [vmem:[#allocation7 + $0x38] sm:$0xf]
    %v163 = vld [vmem:[#allocation7 + $0x3c] sm:$0xf]
    %v164 = vld [vmem:[%s4] sm:$0x1]
    %v166 = vperm.slane %v164, 0
    %v184 = vunpack.c.l.b16 %v148
    %v185 = vunpack.c.l.b16 %v149
    %v186 = vunpack.c.l.b16 %v150
    %v187 = vunpack.c.l.b16 %v151
    %v188 = vunpack.c.l.b16 %v152
    %v189 = vunpack.c.l.b16 %v153
    %v190 = vunpack.c.l.b16 %v154
    %v191 = vunpack.c.l.b16 %v155
    %v192 = vunpack.c.l.b16 %v156
    %v193 = vunpack.c.l.b16 %v157
    %v194 = vunpack.c.l.b16 %v158
    %v195 = vunpack.c.l.b16 %v159
    %v196 = vunpack.c.l.b16 %v160
    %v197 = vunpack.c.l.b16 %v161
    %v198 = vunpack.c.l.b16 %v162
    %v199 = vunpack.c.l.b16 %v163
    %v200 = vpack.c.b16 %v185, %v184
    %v201 = vpack.c.b16 %v187, %v186
    %v202 = vpack.c.b16 %v189, %v188
    %v203 = vpack.c.b16 %v191, %v190
    %v204 = vpack.c.b16 %v193, %v192
    %v205 = vpack.c.b16 %v195, %v194
    %v206 = vpack.c.b16 %v197, %v196
    %v207 = vpack.c.b16 %v199, %v198
    %216 = vmatpush.bf16.msra.mxu0 %v207
    %217 = vmatpush.bf16.msra.mxu0 %v206
    %218 = vmatpush.bf16.msra.mxu0 %v205
    %219 = vmatpush.bf16.msra.mxu0 %v204
    %220 = vmatpush.bf16.msra.mxu0 %v203
    %221 = vmatpush.bf16.msra.mxu0 %v202
    %222 = vmatpush.bf16.msra.mxu0 %v201
    %223 = vmatpush.bf16.msra.mxu0 %v200
    %224 = vmatmul.bf16.gmra.mxu0 %v147
    %v225 = vpop.f32.mrf.mxu0
    %v226 = vadd.f32 %v166, %v225
    %v227 = vpop.f32.mrf.mxu0
    %v228 = vadd.f32 %v166, %v227
    %229 = vdwg.mxu0
    %v230 = vmax.f32 %v226, 0.0
    %v231 = vmax.f32 %v228, 0.0
    %v232 = vpack.c.bf16 %v231, %v230
    %v233 = vld [vmem:[#allocation8] sm:$0xf]
    %v234 = vld [vmem:[#allocation8 + $0x4] sm:$0xf]
    %v235 = vld [vmem:[#allocation8 + $0x8] sm:$0xf]
    %v236 = vld [vmem:[#allocation8 + $0xc] sm:$0xf]
    %v237 = vld [vmem:[#allocation8 + $0x10] sm:$0xf]
    %v238 = vld [vmem:[#allocation8 + $0x14] sm:$0xf]
    %v239 = vld [vmem:[#allocation8 + $0x18] sm:$0xf]
    %v240 = vld [vmem:[#allocation8 + $0x1c] sm:$0xf]
    %v241 = vld [vmem:[#allocation8 + $0x20] sm:$0xf]
    %v242 = vld [vmem:[#allocation8 + $0x24] sm:$0xf]
    %v243 = vld [vmem:[#allocation8 + $0x28] sm:$0xf]
    %v244 = vld [vmem:[#allocation8 + $0x2c] sm:$0xf]
    %v245 = vld [vmem:[#allocation8 + $0x30] sm:$0xf]
    %v246 = vld [vmem:[#allocation8 + $0x34] sm:$0xf]
    %v247 = vld [vmem:[#allocation8 + $0x38] sm:$0xf]
    %v248 = vld [vmem:[#allocation8 + $0x3c] sm:$0xf]
    %v249 = vld [vmem:[%s6] sm:$0x1]
    %v251 = vperm.slane %v249, 0
    %v269 = vunpack.c.l.b16 %v233
    %v270 = vunpack.c.l.b16 %v234
    %v271 = vunpack.c.l.b16 %v235
    %v272 = vunpack.c.l.b16 %v236
    %v273 = vunpack.c.l.b16 %v237
    %v274 = vunpack.c.l.b16 %v238
    %v275 = vunpack.c.l.b16 %v239
    %v276 = vunpack.c.l.b16 %v240
    %v277 = vunpack.c.l.b16 %v241
    %v278 = vunpack.c.l.b16 %v242
    %v279 = vunpack.c.l.b16 %v243
    %v280 = vunpack.c.l.b16 %v244
    %v281 = vunpack.c.l.b16 %v245
    %v282 = vunpack.c.l.b16 %v246
    %v283 = vunpack.c.l.b16 %v247
    %v284 = vunpack.c.l.b16 %v248
    %v285 = vpack.c.b16 %v270, %v269
    %v286 = vpack.c.b16 %v272, %v271
    %v287 = vpack.c.b16 %v274, %v273
    %v288 = vpack.c.b16 %v276, %v275
    %v289 = vpack.c.b16 %v278, %v277
    %v290 = vpack.c.b16 %v280, %v279
    %v291 = vpack.c.b16 %v282, %v281
    %v292 = vpack.c.b16 %v284, %v283
    %301 = vmatpush.bf16.msra.mxu0 %v292
    %302 = vmatpush.bf16.msra.mxu0 %v291
    %303 = vmatpush.bf16.msra.mxu0 %v290
    %304 = vmatpush.bf16.msra.mxu0 %v289
    %305 = vmatpush.bf16.msra.mxu0 %v288
    %306 = vmatpush.bf16.msra.mxu0 %v287
    %307 = vmatpush.bf16.msra.mxu0 %v286
    %308 = vmatpush.bf16.msra.mxu0 %v285
    %309 = vmatmul.bf16.gmra.mxu0 %v232
    %v310 = vpop.f32.mrf.mxu0
    %v311 = vadd.f32 %v251, %v310
    %v312 = vpop.f32.mrf.mxu0
    %v313 = vadd.f32 %v251, %v312
    %314 = vdwg.mxu0
    %v315 = vmax.f32 %v311, 0.0
    %v316 = vmax.f32 %v313, 0.0
    %v317 = vpack.c.bf16 %v316, %v315
    %v318 = vld [vmem:[#allocation10] sm:$0xf]
    %v319 = vld [vmem:[#allocation10 + $0x4] sm:$0xf]
    %v320 = vld [vmem:[#allocation10 + $0x8] sm:$0xf]
    %v321 = vld [vmem:[#allocation10 + $0xc] sm:$0xf]
    %v322 = vld [vmem:[#allocation10 + $0x10] sm:$0xf]
    %v323 = vld [vmem:[#allocation10 + $0x14] sm:$0xf]
    %v324 = vld [vmem:[#allocation10 + $0x18] sm:$0xf]
    %v325 = vld [vmem:[#allocation10 + $0x1c] sm:$0xf]
    %v326 = vld [vmem:[#allocation10 + $0x20] sm:$0xf]
    %v327 = vld [vmem:[#allocation10 + $0x24] sm:$0xf]
    %v328 = vld [vmem:[#allocation10 + $0x28] sm:$0xf]
    %v329 = vld [vmem:[#allocation10 + $0x2c] sm:$0xf]
    %v330 = vld [vmem:[#allocation10 + $0x30] sm:$0xf]
    %v331 = vld [vmem:[#allocation10 + $0x34] sm:$0xf]
    %v332 = vld [vmem:[#allocation10 + $0x38] sm:$0xf]
    %v333 = vld [vmem:[#allocation10 + $0x3c] sm:$0xf]
    %v334 = vld [vmem:[%s8] sm:$0x1]
    %v336 = vperm.slane %v334, 0
    %v354 = vunpack.c.l.b16 %v318
    %v355 = vunpack.c.l.b16 %v319
    %v356 = vunpack.c.l.b16 %v320
    %v357 = vunpack.c.l.b16 %v321
    %v358 = vunpack.c.l.b16 %v322
    %v359 = vunpack.c.l.b16 %v323
    %v360 = vunpack.c.l.b16 %v324
    %v361 = vunpack.c.l.b16 %v325
    %v362 = vunpack.c.l.b16 %v326
    %v363 = vunpack.c.l.b16 %v327
    %v364 = vunpack.c.l.b16 %v328
    %v365 = vunpack.c.l.b16 %v329
    %v366 = vunpack.c.l.b16 %v330
    %v367 = vunpack.c.l.b16 %v331
    %v368 = vunpack.c.l.b16 %v332
    %v369 = vunpack.c.l.b16 %v333
    %v370 = vpack.c.b16 %v355, %v354
    %v371 = vpack.c.b16 %v357, %v356
    %v372 = vpack.c.b16 %v359, %v358
    %v373 = vpack.c.b16 %v361, %v360
    %v374 = vpack.c.b16 %v363, %v362
    %v375 = vpack.c.b16 %v365, %v364
    %v376 = vpack.c.b16 %v367, %v366
    %v377 = vpack.c.b16 %v369, %v368
    %386 = vmatpush.bf16.msra.mxu0 %v377
    %387 = vmatpush.bf16.msra.mxu0 %v376
    %388 = vmatpush.bf16.msra.mxu0 %v375
    %389 = vmatpush.bf16.msra.mxu0 %v374
    %390 = vmatpush.bf16.msra.mxu0 %v373
    %391 = vmatpush.bf16.msra.mxu0 %v372
    %392 = vmatpush.bf16.msra.mxu0 %v371
    %393 = vmatpush.bf16.msra.mxu0 %v370
    %394 = vmatmul.bf16.gmra.mxu0 %v317
    %v395 = vpop.f32.mrf.mxu0
    %v396 = vadd.f32 %v336, %v395
    %v397 = vpop.f32.mrf.mxu0
    %v398 = vadd.f32 %v336, %v397
    %399 = vdwg.mxu0
    %v400 = vpack.c.bf16 %v396, %v396
    %v401 = vpack.c.bf16 %v398, %v398
    %402 = vst [vmem:[#allocation11] sm:$0xf] %v400
    %403 = vst [vmem:[#allocation11 + $0x4] sm:$0xf] %v401
    // Predicated region
    $region58: #{tpu_custom_call.1} parent=1 // pred_check
      _
    $region59: #{tpu_custom_call.1} parent=1 // pred_check_branch
      %405 = sbr.rel (0) target = $region61
    $region60: #{tpu_custom_call.1} parent=1 // pred_region
      %407 = vsyncadd [#allocation4], 0
      %s408 = sshll.u32 [#allocation11], 4
      %s409 = int_to_ptr.vmem [resolvable:$true] %s408
      %s410 = sshll.u32 %s9, 4
      %s411 = int_to_ptr.hbm [resolvable:$true] %s410
      %416 = dma.vmem_to_hbm [thread:$0]  %s409, 128, %s411, [#allocation4], 64, 64, 4
    $region61: #{tpu_custom_call.1} parent=1 // pred_fallthru
      _
    // Predicated region
    $region62: #{tpu_custom_call.1} parent=1 // pred_check
      _
    $region63: #{tpu_custom_call.1} parent=1 // pred_check_branch
      %418 = sbr.rel (0) target = $region65
    $region64: #{tpu_custom_call.1} parent=1 // pred_region
      %420 = dma.done [#allocation4], 128
    $region65: #{tpu_custom_call.1} parent=1 // pred_fallthru
      _
    %421 = vsyncpa [#allocation3], 1
    %422 = vsyncpa [#allocation6], 1
    %423 = vsyncpa [#allocation9], 1
    %424 = vsyncpa [#allocation4], 1

</llo_original>
